<compile_context>
chip_gen: v7x
topology: tpu7x:2x2x1
jax: 0.10.0
libtpu: 0.0.40
codegen_flags: <defaults>
</compile_context>

<pallas_src>
import functools
import math

import numpy as np
import jax
import jax.numpy as jnp
from jax.experimental import pallas as pl
from jax.experimental.pallas import tpu as pltpu

LN_EPS = 1e-5
NEG_INF = -1e9


# ---------------------------------------------------------------------------
# In-kernel helpers
# ---------------------------------------------------------------------------

def _layernorm_rows(x, w_row, b_row):
    mu = jnp.mean(x, axis=-1, keepdims=True)
    var = jnp.mean((x - mu) ** 2, axis=-1, keepdims=True)
    return (x - mu) * jax.lax.rsqrt(var + LN_EPS) * w_row + b_row


def _gelu_tanh(x):
    # tanh-form GELU: 1 EUP tanh + ~5 VALU ops (vs ~12 dependent VALU ops for an erf
    # polynomial); max abs deviation from exact-erf GELU is a few 1e-4 (inside tolerance).
    c = math.sqrt(2.0 / math.pi)
    return 0.5 * x * (1.0 + jnp.tanh(c * (x + 0.044715 * (x * x * x))))


# ---------------------------------------------------------------------------
# Setup-only Pallas kernel: Linear -> ReLU -> Linear(no bias)
# (PosEmbMLPSwinv1D / PosEmbMLPSwinv2D cpb_mlp; run once at setup)
# ---------------------------------------------------------------------------

def _mlp2_kernel(x_ref, w1_ref, b1_ref, w2_ref, o_ref):
    h = jnp.dot(x_ref[...], w1_ref[...], preferred_element_type=jnp.float32) + b1_ref[...]
    h = jnp.maximum(h, 0.0)
    o_ref[...] = jnp.dot(h, w2_ref[...], preferred_element_type=jnp.float32)


def pallas_mlp2(x, w1, b1, w2):
    m = x.shape[0]
    d = w2.shape[1]
    return pl.pallas_call(
        _mlp2_kernel,
        out_shape=jax.ShapeDtypeStruct((m, d), jnp.float32),
    )(x, w1, b1.reshape(1, -1), w2)


# ---------------------------------------------------------------------------
# Fused HAT forward kernel
# ---------------------------------------------------------------------------

def _hat_fused_kernel(
        ct_ref, x_ref,
        pdw_ref, pect_ref, pex_ref, asel_ref, bias_hat_ref, biasmask_ref,
        hat_vec_ref, hat_wqkv_ref, hat_wproj_ref, hat_w1_ref, hat_b1_ref, hat_w2_ref,
        loc_vec_ref, loc_wqkv_ref, loc_wproj_ref, loc_w1_ref, loc_b1_ref, loc_w2_ref,
        ox_ref, oct_ref, *, num_heads, head_dim):
    """Whole HAT forward for a block of IPB images.

    Local-stage row layout per image: [carrier block (Ng rows, (window, slot) order),
    x block (Wn*T rows, (window, token) order)].  Window locality is enforced with a
    precomputed block-diagonal bias+mask matrix, so attention runs over all windows of
    the image at once.
    """
    f32 = jnp.float32
    bf = jnp.bfloat16
    IPB, Ng, C = ct_ref.shape

    pdw = pdw_ref[...]                       # (Ng, Ng)  dewindow permutation matrix
    pect = pect_ref[...]                     # (Ng, C)   carrier pos-emb (dewindow order)
    pex = pex_ref[...]                       # (RX, C)   per-row local pos-emb
    asel = asel_ref[...]                     # (Ng, Ng)  window-order selection matrix
    bias_hat = bias_hat_ref[...]             # (H, Ng, Ng)
    biasmask = biasmask_ref[...]             # (H, R, R) rel-pos bias + window mask

    def load_stage(vec_ref, wqkv_ref, wproj_ref, w1_ref, b1_ref, w2_ref):
        vec = vec_ref[...]                   # (6, C) f32
        return dict(ln1w=vec[0:1, :], ln1b=vec[1:2, :],
                    ln2w=vec[2:3, :], ln2b=vec[3:4, :],
                    bproj=vec[4:5, :], b2=vec[5:6, :],
                    wqkv=wqkv_ref[...], wproj=wproj_ref[...],
                    w1=w1_ref[...], b1=b1_ref[...], w2=w2_ref[...])

    hat_p = load_stage(hat_vec_ref, hat_wqkv_ref, hat_wproj_ref,
                       hat_w1_ref, hat_b1_ref, hat_w2_ref)
    loc_p = load_stage(loc_vec_ref, loc_wqkv_ref, loc_wproj_ref,
                       loc_w1_ref, loc_b1_ref, loc_w2_ref)

    def stage(rows, bias_full, p):
        # rows: (R, C) f32.  LN -> MHA (bias_full already holds bias + window mask)
        # -> proj -> +residual -> LN -> MLP(GELU tanh) -> +residual.  gammas == 1.
        xn = _layernorm_rows(rows, p['ln1w'], p['ln1b']).astype(bf)
        qkv = jnp.dot(xn, p['wqkv'], preferred_element_type=f32)        # (R, 3C)
        heads = []
        for h in range(num_heads):                                      # H = 4
            q = qkv[:, h * head_dim:(h + 1) * head_dim].astype(bf)      # scale pre-folded
            k = qkv[:, C + h * head_dim:C + (h + 1) * head_dim].astype(bf)
            v = qkv[:, 2 * C + h * head_dim:2 * C + (h + 1) * head_dim].astype(bf)
            s = jnp.einsum('qd,kd->qk', q, k,
                           preferred_element_type=f32) + bias_full[h]   # (R, R)
            s = jnp.exp(s - jnp.max(s, axis=-1, keepdims=True))
            s = s * pl.reciprocal(jnp.sum(s, axis=-1, keepdims=True), approx=True)
            heads.append(jnp.dot(s.astype(bf), v, preferred_element_type=f32))
        attn = jnp.concatenate(heads, axis=-1).astype(bf)               # (R, C)
        x1 = rows + jnp.dot(attn, p['wproj'], preferred_element_type=f32) + p['bproj']
        xn2 = _layernorm_rows(x1, p['ln2w'], p['ln2b']).astype(bf)
        hmid = jnp.dot(xn2, p['w1'], preferred_element_type=f32) + p['b1']
        hmid = _gelu_tanh(hmid).astype(bf)
        return x1 + jnp.dot(hmid, p['w2'], preferred_element_type=f32) + p['b2']

    for b in range(IPB):                     # images in this block (static, 1 or 2)
        # carrier-token branch: dewindow (permutation matmul) + pos-emb + stage
        ct_de = jnp.dot(pdw, ct_ref[b], preferred_element_type=f32) + pect
        ct_o = stage(ct_de, bias_hat, hat_p)                            # (Ng, C)
        ct_win = jnp.dot(asel, ct_o, preferred_element_type=f32)        # window order
        # local stage: [carrier rows, x rows] assembled in registers (no HBM round-trip)
        rows = jnp.concatenate([ct_win, x_ref[b] + pex], axis=0)        # (Ng + RX, C)
        out = stage(rows, biasmask, loc_p)
        oct_ref[b] = out[0:Ng, :]
        ox_ref[b] = out[Ng:, :]


def pick_images_per_block(num_images):
    """One grid step on single-TC chips (v5e/v6e); image-parallel 2-step grid on v7x."""
    kind = ""
    try:
        kind = jax.devices()[0].device_kind.lower()
    except Exception:
        pass
    if "v7" in kind and num_images % 2 == 0:
        return num_images // 2
    return num_images


def make_hat_pallas(fused_inputs, *, Bg, Ng, RX, C, H, Hd, images_per_block):
    hd = C // H
    IPB = images_per_block
    assert Bg % IPB == 0
    R = Ng + RX
    C3 = 3 * C

    def cspec(shape):
        rank = len(shape)
        return pl.BlockSpec(shape, lambda i, _r=rank: (0,) * _r)

    stage_specs = [cspec((6, C)), cspec((C, C3)), cspec((C, C)),
                   cspec((C, Hd)), cspec((1, Hd)), cspec((Hd, C))]

    in_specs = ([pl.BlockSpec((IPB, Ng, C), lambda i: (i, 0, 0)),     # ct
                 pl.BlockSpec((IPB, RX, C), lambda i: (i, 0, 0)),     # x (per-image rows)
                 cspec((Ng, Ng)),        # P_dw
                 cspec((Ng, C)),         # pe_ct
                 cspec((RX, C)),         # pe_x rows
                 cspec((Ng, Ng)),        # A_sel
                 cspec((H, Ng, Ng)),     # bias_hat
                 cspec((H, R, R))]       # biasmask (local)
                + stage_specs            # carrier-stage params
                + stage_specs)           # local-stage params

    out_specs = (pl.BlockSpec((IPB, RX, C), lambda i: (i, 0, 0)),
                 pl.BlockSpec((IPB, Ng, C), lambda i: (i, 0, 0)))

    call = pl.pallas_call(
        functools.partial(_hat_fused_kernel, num_heads=H, head_dim=hd),
        out_shape=(jax.ShapeDtypeStruct((Bg, RX, C), jnp.float32),
                   jax.ShapeDtypeStruct((Bg, Ng, C), jnp.float32)),
        grid=(Bg // IPB,),
        in_specs=in_specs,
        out_specs=out_specs,
        compiler_params=pltpu.CompilerParams(dimension_semantics=("parallel",)),
    )

    def forward(x, ct):
        B, T, _ = x.shape
        x2 = x.reshape(Bg, RX, C)                  # free: leading-dim reshape only
        ox, oct_ = call(ct, x2, *fused_inputs)
        return ox.reshape(B, T, C), oct_

    return forward


# ---------------------------------------------------------------------------
# Plain-JAX glue (mirrors the PyTorch helpers) -- reference path + index tracing
# ---------------------------------------------------------------------------

def ct_dewindow(ct, w, h, window_size):
    bs, _, n = ct.shape
    c = ct.reshape(-1, w // window_size, h // window_size, window_size, window_size, n)
    c = jnp.transpose(c, (0, 5, 1, 3, 2, 4))
    c = c.reshape(bs, n, w * h)
    return jnp.transpose(c, (0, 2, 1))


def ct_window(ct, w, h, window_size):
    bs, _, n = ct.shape
    c = ct.reshape(bs, h // window_size, window_size, w // window_size, window_size, n)
    return jnp.transpose(c, (0, 1, 3, 2, 4, 5))


def coords_table_1d(seq_length):
    # PosEmbMLPSwinv1D (rank=2): sqrt(seq) x sqrt(seq) grid shifted/scaled by s//2.
    s = int(round(math.sqrt(seq_length)))
    r = (jnp.arange(s, dtype=jnp.float32) - (s // 2)) / (s // 2)
    hh, ww = jnp.meshgrid(r, r, indexing="ij")
    return jnp.stack([hh, ww], axis=-1).reshape(s * s, 2)        # (seq, 2)


def rel_coords_table_2d(ws):
    # PosEmbMLPSwinv2D relative_coords_table (log-spaced).
    rc = jnp.arange(-(ws - 1), ws, dtype=jnp.float32)
    hh, ww = jnp.meshgrid(rc, rc, indexing="ij")
    tbl = jnp.stack([hh, ww], axis=-1)                           # (2ws-1, 2ws-1, 2)
    tbl = tbl / float(ws - 1)
    tbl = tbl * 8.0
    tbl = jnp.sign(tbl) * jnp.log2(jnp.abs(tbl) + 1.0) / np.log2(8.0)
    return tbl.reshape(-1, 2)                                    # ((2ws-1)^2, 2)


def rel_position_index_2d(ws):
    gh, gw = np.meshgrid(np.arange(ws), np.arange(ws), indexing="ij")
    cf = np.stack([gh.reshape(-1), gw.reshape(-1)], axis=0)      # (2, ws^2)
    rel = cf[:, :, None] - cf[:, None, :]
    rel = np.transpose(rel, (1, 2, 0)).astype(np.int32)
    rel[..., 0] += ws - 1
    rel[..., 1] += ws - 1
    rel[..., 0] *= 2 * ws - 1
    return jnp.asarray(rel.sum(-1))                              # (ws^2, ws^2)


def rel_pos_bias_2d(ws, cpb_w1, cpb_b1, cpb_w2, num_heads, n_global, mlp2_fn):
    table = rel_coords_table_2d(ws)
    bias_tbl = mlp2_fn(table, cpb_w1, cpb_b1, cpb_w2)            # ((2ws-1)^2, H)
    idx = rel_position_index_2d(ws).reshape(-1)
    bias = bias_tbl[idx].reshape(ws * ws, ws * ws, num_heads)
    bias = jnp.transpose(bias, (2, 0, 1))
    bias = 16.0 * jax.nn.sigmoid(bias)
    if n_global > 0:                                             # F.pad(..., (n,0,n,0))
        bias = jnp.pad(bias, ((0, 0), (n_global, 0), (n_global, 0)))
    return bias                                                  # (H, S, S)


# --- pure-jnp reference (validates the fused Pallas kernel) ---

def ref_mlp2(x, w1, b1, w2):
    return jnp.maximum(x @ w1 + b1, 0.0) @ w2


def ref_layernorm(x, w, b):
    mu = jnp.mean(x, axis=-1, keepdims=True)
    var = jnp.mean((x - mu) ** 2, axis=-1, keepdims=True)
    return (x - mu) / jnp.sqrt(var + LN_EPS) * w + b


def ref_window_attn(x, ln_w, ln_b, wq, wk, wv, wproj_h, bproj, bias, num_heads, scale):
    xn = ref_layernorm(x, ln_w, ln_b)
    q = jnp.einsum("bsc,hcd->bhsd", xn, wq)
    k = jnp.einsum("bsc,hcd->bhsd", xn, wk)
    v = jnp.einsum("bsc,hcd->bhsd", xn, wv)
    a = jnp.einsum("bhqd,bhkd->bhqk", q, k) * scale + bias[None]
    a = jax.nn.softmax(a, axis=-1)
    o = jnp.einsum("bhqk,bhkd->bhqd", a, v)
    return jnp.einsum("bhsd,hdc->bsc", o, wproj_h) + bproj


def ref_mlp_block(x, ln_w, ln_b, w1, b1, w2, b2):
    xn = ref_layernorm(x, ln_w, ln_b)
    h = jax.nn.gelu(xn @ w1 + b1, approximate=False)
    return h @ w2 + b2


def ref_stage(x, ln1_w, ln1_b, wq, wk, wv, wproj, bproj, bias,
              ln2_w, ln2_b, w1, b1, w2, b2, num_heads, scale):
    x = x + ref_window_attn(x, ln1_w, ln1_b, wq, wk, wv, wproj, bproj, bias,
                            num_heads, scale)
    x = x + ref_mlp_block(x, ln2_w, ln2_b, w1, b1, w2, b2)
    return x


# ---------------------------------------------------------------------------
# Static (input-independent) precompute + HAT reference forward
# ---------------------------------------------------------------------------

def precompute_static(params, cfg, T, Ng, S_local, mlp2_fn):
    """Pos-embeddings and rel-pos-bias tables: depend only on params / static coords."""
    H = cfg["num_heads"]
    ws = cfg["window_size"]
    pe = mlp2_fn(coords_table_1d(T), params["pe_w1"], params["pe_b1"], params["pe_w2"])
    pe_ct = mlp2_fn(coords_table_1d(Ng), params["hpe_w1"], params["hpe_b1"],
                    params["hpe_w2"])
    hat_res = int(round(math.sqrt(Ng)))
    hat_bias = rel_pos_bias_2d(hat_res, params["hat_cpb_w1"], params["hat_cpb_b1"],
                               params["hat_cpb_w2"], H, Ng - hat_res * hat_res, mlp2_fn)
    bias = rel_pos_bias_2d(ws, params["cpb_w1"], params["cpb_b1"], params["cpb_w2"],
                           H, S_local - ws * ws, mlp2_fn)
    return dict(pe=pe, pe_ct=pe_ct, hat_bias=hat_bias, bias=bias)


def hat_forward(x, ct, params, static, cfg, *, stage_fn):
    """Reference forward (plain JAX), mirrors the PyTorch HAT.forward."""
    B, T, N = x.shape
    Bg, Ng, Hg = ct.shape
    H = cfg["num_heads"]
    hd = N // H
    scale = hd ** (-0.5)
    ws = cfg["window_size"]
    cr = cfg["ct_size"]
    sr = cfg["sr_ratio"]

    x = x + static["pe"][None]

    W = cr * sr[0]
    ct = ct_dewindow(ct, W, W, cr)
    ct = ct + static["pe_ct"][None]
    ct = stage_fn(ct, params["hat_norm1_w"], params["hat_norm1_b"],
                  params["hat_wq"], params["hat_wk"], params["hat_wv"],
                  params["hat_wproj"], params["hat_bproj"], static["hat_bias"],
                  params["hat_norm2_w"], params["hat_norm2_b"],
                  params["hat_mlp_w1"], params["hat_mlp_b1"],
                  params["hat_mlp_w2"], params["hat_mlp_b2"], H, scale)
    ct = ct_window(ct, W, W, cr).reshape(B, -1, N)
    x = jnp.concatenate([ct, x], axis=1)

    x = stage_fn(x, params["norm1_w"], params["norm1_b"],
                 params["wq"], params["wk"], params["wv"],
                 params["wproj"], params["bproj"], static["bias"],
                 params["norm2_w"], params["norm2_b"],
                 params["mlp_w1"], params["mlp_b1"], params["mlp_w2"], params["mlp_b2"],
                 H, scale)

    n_ct = x.shape[1] - ws * ws
    ctr, x = x[:, :n_ct], x[:, n_ct:]
    ct_out = ctr.reshape(Bg, Ng, Hg)
    return x, ct_out


# ---------------------------------------------------------------------------
# Wrapper-side packing of everything the fused kernel needs (setup-time only)
# ---------------------------------------------------------------------------

def build_fused_inputs(params, static, cfg, Bg, T, Ng, S_local, mlp_hidden):
    C = int(params["mlp_w1"].shape[0])
    H = cfg["num_heads"]
    hd = C // H
    cr = cfg["ct_size"]
    sr = cfg["sr_ratio"]
    Wn = sr[0] * sr[1]
    W = cr * sr[0]
    cr2 = cr * cr
    scale = hd ** (-0.5)
    RX = Wn * T
    R = Ng + RX
    bf = jnp.bfloat16

    # Permutation / selection indices traced numerically through the same glue the
    # reference uses (no hand-derived index math).
    idxv = jnp.arange(Ng, dtype=jnp.float32).reshape(1, Ng, 1)
    pi = np.asarray(ct_dewindow(idxv, W, W, cr))[0, :, 0].round().astype(np.int64)
    P_dw = np.zeros((Ng, Ng), np.float32)
    P_dw[np.arange(Ng), pi] = 1.0
    csr = np.asarray(ct_window(idxv, W, W, cr)).reshape(Wn, cr2).round().astype(np.int64)
    A_sel = np.zeros((Ng, Ng), np.float32)
    for w in range(Wn):
        for t in range(cr2):
            A_sel[w * cr2 + t, csr[w, t]] = 1.0

    pe_x = np.tile(np.asarray(static["pe"], np.float32), (Wn, 1))        # (RX, C)
    pe_ct = np.asarray(static["pe_ct"], np.float32)                      # (Ng, C)
    bias_hat = np.asarray(static["hat_bias"], np.float32)                # (H, Ng, Ng)
    bias_loc = np.asarray(static["bias"], np.float32)                    # (H, S_loc, S_loc)

    # Block-diagonal bias + window mask for the local stage, in the kernel's row order:
    # [carrier block (Ng rows, (w, slot)), x block (Wn*T rows, (w, token))].
    biasmask = np.full((H, R, R), NEG_INF, np.float32)
    for w in range(Wn):
        rows = np.concatenate([w * cr2 + np.arange(cr2), Ng + w * T + np.arange(T)])
        biasmask[:, rows[:, None], rows[None, :]] = bias_loc

    def pack_stage(pfx):
        wq = np.asarray(params[pfx + "wq"], np.float32)       # (H, C, hd)
        wk = np.asarray(params[pfx + "wk"], np.float32)
        wv = np.asarray(params[pfx + "wv"], np.float32)

        def cols(wp):
            return np.transpose(wp, (1, 0, 2)).reshape(C, H * hd)

        wqkv = np.concatenate([cols(wq) * scale, cols(wk), cols(wv)], axis=1)  # (C, 3C)
        wproj = np.asarray(params[pfx + "wproj"], np.float32).reshape(H * hd, C)
        vec = np.stack([
            np.asarray(params[pfx + "norm1_w"], np.float32),
            np.asarray(params[pfx + "norm1_b"], np.float32),
            np.asarray(params[pfx + "norm2_w"], np.float32),
            np.asarray(params[pfx + "norm2_b"], np.float32),
            np.asarray(params[pfx + "bproj"], np.float32),
            np.asarray(params[pfx + "mlp_b2"], np.float32),
        ], axis=0)                                                              # (6, C)
        w1 = np.asarray(params[pfx + "mlp_w1"], np.float32)                     # (C, Hd)
        b1 = np.asarray(params[pfx + "mlp_b1"], np.float32).reshape(1, -1)      # (1, Hd)
        w2 = np.asarray(params[pfx + "mlp_w2"], np.float32)                     # (Hd, C)
        return (jnp.asarray(vec), jnp.asarray(wqkv).astype(bf),
                jnp.asarray(wproj).astype(bf), jnp.asarray(w1).astype(bf),
                jnp.asarray(b1), jnp.asarray(w2).astype(bf))

    consts = (jnp.asarray(P_dw), jnp.asarray(pe_ct), jnp.asarray(pe_x),
              jnp.asarray(A_sel), jnp.asarray(bias_hat), jnp.asarray(biasmask))
    return consts + pack_stage("hat_") + pack_stage("")


# ---------------------------------------------------------------------------
# Deterministic parameter initialization (synthetic, matching __init__ shapes)
# ---------------------------------------------------------------------------

def init_params(key, dim, num_heads, mlp_hidden):
    hd = dim // num_heads
    keys = iter(jax.random.split(key, 64))

    def w(shape, scale=0.05):
        return scale * jax.random.normal(next(keys), shape, dtype=jnp.float32)

    def split_qkv(wqkv):
        # (dim, 3*dim) columns ordered [qkv, head, head_dim] -> (3, H, dim, hd)
        wr = jnp.transpose(wqkv.reshape(dim, 3, num_heads, hd), (1, 2, 0, 3))
        return wr[0], wr[1], wr[2]

    p = {}
    p["pe_w1"], p["pe_b1"], p["pe_w2"] = w((2, 512)), w((512,)), w((512, dim))
    p["hpe_w1"], p["hpe_b1"], p["hpe_w2"] = w((2, 512)), w((512,)), w((512, dim))
    for nm in ("norm1", "norm2", "hat_norm1", "hat_norm2"):
        p[nm + "_w"] = 1.0 + w((dim,), 0.1)
        p[nm + "_b"] = w((dim,), 0.1)
    wqkv = w((dim, 3 * dim))
    p["wq"], p["wk"], p["wv"] = split_qkv(wqkv)
    p["wproj"] = w((dim, dim)).reshape(num_heads, hd, dim)
    p["bproj"] = w((dim,))
    p["cpb_w1"], p["cpb_b1"], p["cpb_w2"] = w((2, 512)), w((512,)), w((512, num_heads), 0.2)
    wqkv = w((dim, 3 * dim))
    p["hat_wq"], p["hat_wk"], p["hat_wv"] = split_qkv(wqkv)
    p["hat_wproj"] = w((dim, dim)).reshape(num_heads, hd, dim)
    p["hat_bproj"] = w((dim,))
    p["hat_cpb_w1"], p["hat_cpb_b1"], p["hat_cpb_w2"] = (w((2, 512)), w((512,)),
                                                         w((512, num_heads), 0.2))
    p["mlp_w1"], p["mlp_b1"] = w((dim, mlp_hidden)), w((mlp_hidden,))
    p["mlp_w2"], p["mlp_b2"] = w((mlp_hidden, dim)), w((dim,))
    p["hat_mlp_w1"], p["hat_mlp_b1"] = w((dim, mlp_hidden)), w((mlp_hidden,))
    p["hat_mlp_w2"], p["hat_mlp_b2"] = w((mlp_hidden, dim)), w((dim,))
    return p


# ---------------------------------------------------------------------------
# Main
# ---------------------------------------------------------------------------

if __name__ == "__main__":
    dim, num_heads, window_size, ct_size = 32, 4, 4, 2
    sr_ratio = (2, 2)
    mlp_hidden = int(dim * 4.0)
    cfg = dict(num_heads=num_heads, window_size=window_size,
               ct_size=ct_size, sr_ratio=sr_ratio)

    Bg = 2                                           # image batch
    Wn = sr_ratio[0] * sr_ratio[1]                   # 4 local windows per image
    B = Bg * Wn                                      # batch of local windows = 8
    T = window_size * window_size                    # 16 tokens per local window
    Ng = (ct_size ** 2) * Wn                         # 16 carrier tokens per image
    S_local = T + ct_size * ct_size                  # 20 tokens in local attention

    key = jax.random.PRNGKey(0)
    kx, kc, kp = jax.random.split(key, 3)
    x = jax.random.normal(kx, (B, T, dim), dtype=jnp.float32)
    carrier_tokens = jax.random.normal(kc, (Bg, Ng, dim), dtype=jnp.float32)
    params = init_params(kp, dim, num_heads, mlp_hidden)

    # Input-independent tensors computed ONCE at setup (not re-launched per forward).
    static_pallas = precompute_static(params, cfg, T, Ng, S_local, mlp2_fn=pallas_mlp2)
    static_ref = precompute_static(params, cfg, T, Ng, S_local, mlp2_fn=ref_mlp2)
    jax.block_until_ready(static_pallas)

    fused_inputs = build_fused_inputs(params, static_pallas, cfg, Bg=Bg, T=T, Ng=Ng,
                                      S_local=S_local, mlp_hidden=mlp_hidden)
    ipb = pick_images_per_block(Bg)
    hat_pallas = make_hat_pallas(fused_inputs, Bg=Bg, Ng=Ng, RX=Wn * T, C=dim,
                                 H=num_heads, Hd=mlp_hidden, images_per_block=ipb)

    fwd_pallas = jax.jit(hat_pallas)
    fwd_ref = jax.jit(functools.partial(
        hat_forward, params=params, static=static_ref, cfg=cfg, stage_fn=ref_stage))

    x_out, ct_out = fwd_pallas(x, carrier_tokens)
    jax.block_until_ready((x_out, ct_out))

    x_ref, ct_ref = fwd_ref(x, carrier_tokens)
    jax.block_until_ready((x_ref, ct_ref))

    assert x_out.shape == (B, T, dim) and ct_out.shape == (Bg, Ng, dim)
    # bf16-operand matmuls, tanh-GELU and approx-reciprocal softmax in the kernel vs.
    # f32 exact reference: allow ~1% tolerance.
    np.testing.assert_allclose(np.asarray(x_out), np.asarray(x_ref), rtol=2e-2, atol=2e-2)
    np.testing.assert_allclose(np.asarray(ct_out), np.asarray(ct_ref), rtol=2e-2, atol=2e-2)

    print("KERNEL_OK")
</pallas_src>

<mosaic_0001>
module attributes {stable_mosaic.version = 11 : i64} {
  func.func @_mlp2_kernel(%arg0: memref<16x2xf32, #tpu.memory_space<vmem>>, %arg1: memref<2x512xf32, #tpu.memory_space<vmem>>, %arg2: memref<1x512xf32, #tpu.memory_space<vmem>>, %arg3: memref<512x32xf32, #tpu.memory_space<vmem>>, %arg4: memref<16x32xf32, #tpu.memory_space<vmem>>) attributes {dimension_semantics = [], scalar_prefetch = 0 : i64, scratch_operands = 0 : i64, tpu.core_type = #tpu.core_type<tc>} {
    %c0 = arith.constant 0 : index
    %c0_0 = arith.constant 0 : index
    %0 = vector.load %arg0[%c0, %c0_0] : memref<16x2xf32, #tpu.memory_space<vmem>>, vector<16x2xf32>
    %c0_1 = arith.constant 0 : index
    %c0_2 = arith.constant 0 : index
    %1 = vector.load %arg1[%c0_1, %c0_2] : memref<2x512xf32, #tpu.memory_space<vmem>>, vector<2x512xf32>
    %cst = arith.constant dense<0.000000e+00> : vector<16x512xf32>
    %2 = tpu.matmul %0, %1, %cst {dimension_numbers = #tpu.dot_dimension_numbers<[1], [0], [0], [1], [0, 0, 1, 1], [], []>} : vector<16x2xf32>, vector<2x512xf32>, vector<16x512xf32> -> vector<16x512xf32>
    %c0_3 = arith.constant 0 : index
    %c0_4 = arith.constant 0 : index
    %3 = vector.load %arg2[%c0_3, %c0_4] : memref<1x512xf32, #tpu.memory_space<vmem>>, vector<1x512xf32>
    %4 = vector.broadcast %3 : vector<1x512xf32> to vector<16x512xf32>
    %5 = arith.addf %2, %4 : vector<16x512xf32>
    %cst_5 = arith.constant 0.000000e+00 : f32
    %6 = vector.broadcast %cst_5 : f32 to vector<16x512xf32>
    %7 = arith.maximumf %5, %6 : vector<16x512xf32>
    %c0_6 = arith.constant 0 : index
    %c0_7 = arith.constant 0 : index
    %8 = vector.load %arg3[%c0_6, %c0_7] : memref<512x32xf32, #tpu.memory_space<vmem>>, vector<512x32xf32>
    %cst_8 = arith.constant dense<0.000000e+00> : vector<16x32xf32>
    %9 = tpu.matmul %7, %8, %cst_8 {dimension_numbers = #tpu.dot_dimension_numbers<[1], [0], [0], [1], [0, 0, 1, 1], [], []>} : vector<16x512xf32>, vector<512x32xf32>, vector<16x32xf32> -> vector<16x32xf32>
    %c0_9 = arith.constant 0 : index
    %c0_10 = arith.constant 0 : index
    %10 = vector.load %arg4[%c0_9, %c0_10] : memref<16x32xf32, #tpu.memory_space<vmem>>, vector<16x32xf32>
    tpu.vector_store %arg4[%c0_9, %c0_10], %9 {strides = array<i32>} : memref<16x32xf32, #tpu.memory_space<vmem>>, vector<16x32xf32>,
    return
  }
}

</mosaic_0001>

<llo_original>
// kernel: tpu_custom_call.1
$region0: #{tpu_custom_call.1}
  #allocation0 [shape = 'u32[]', space=smem, size = 0x4, offset = 0x4, fixed_abs, tag = 'smem constant byte address 0x4 - core index']
  #allocation1 [shape = 'u32[144,128]{1,0:T(1,128)}', space=vmem, size = 0x12000, scoped, tag = 'internal scratch']
  %s0 = inlined_call_operand.vmem [shape: f32[16,2], index: 0, kind: input, shape index: {}]
  %s1 = inlined_call_operand.vmem [shape: f32[2,512], index: 1, kind: input, shape index: {}]
  %s2 = inlined_call_operand.vmem [shape: f32[1,512], index: 2, kind: input, shape index: {}]
  %s3 = inlined_call_operand.vmem [shape: f32[512,32], index: 3, kind: input, shape index: {}]
  %s4 = inlined_call_operand.hbm [shape: f32[16,32], index: 4, kind: output, shape index: {}]
  %s5 = sld [smem:[#allocation0]]
  $region26: #{tpu_custom_call.1} parent=0
    _
  %s7 = ssub.s32 1, %s5
  %s8 = scalar_select 0, %s7, %s5
  $region1: #{tpu_custom_call.1} parent=0
    #allocation2 [shape = 'u8[8192]{0}', space=vmem, size = 0x2000, scoped, tag = 'output window, operand 0, single buffered']
    #allocation3 [shape = 's32[1]{0}', space=sflag, size = 0x4, scoped, tag = 'scoped memory for tpu_custom_call.1']
    %9 = vsyncpa [#allocation3], 0
    // Predicated region
    $region2: #{tpu_custom_call.1} parent=1 // pred_check
      _
    $region3: #{tpu_custom_call.1} parent=1 // pred_check_branch
      %11 = sbr.rel (0) target = $region5
    $region4: #{tpu_custom_call.1} parent=1 // pred_region
      _
    $region5: #{tpu_custom_call.1} parent=1 // pred_fallthru
      _
    // Predicated region
    $region6: #{tpu_custom_call.1} parent=1 // pred_check
      _
    $region7: #{tpu_custom_call.1} parent=1 // pred_check_branch
      %13 = sbr.rel (0) target = $region9
    $region8: #{tpu_custom_call.1} parent=1 // pred_region
      _
    $region9: #{tpu_custom_call.1} parent=1 // pred_fallthru
      _
    // Predicated region
    $region10: #{tpu_custom_call.1} parent=1 // pred_check
      _
    $region11: #{tpu_custom_call.1} parent=1 // pred_check_branch
      %15 = sbr.rel (0) target = $region13
    $region12: #{tpu_custom_call.1} parent=1 // pred_region
      _
    $region13: #{tpu_custom_call.1} parent=1 // pred_fallthru
      _
    // Predicated region
    $region14: #{tpu_custom_call.1} parent=1 // pred_check
      _
    $region15: #{tpu_custom_call.1} parent=1 // pred_check_branch
      %17 = sbr.rel (0) target = $region17
    $region16: #{tpu_custom_call.1} parent=1 // pred_region
      _
    $region17: #{tpu_custom_call.1} parent=1 // pred_fallthru
      _
    %v18 = vld [vmem:[%s0] sm:$0xff]
    %v19 = vld [vmem:[%s0 + $0x8] sm:$0xff]
    %v20 = vld [vmem:[%s1] sm:$0xff]
    %v21 = vld [vmem:[%s2] sm:$0xf]
    %v23 = vlaneseq
    %v24 = vshrl.u32 %v23, 7
    %v25 = vsub.s32 0, %v24
    %v26 = vrot.slane %v21, %v25
    %v27 = vlaneseq
    %v28 = vshrl.u32 %v27, 7
    %v29 = vsub.s32 1, %v28
    %v30 = vrot.slane %v21, %v29
    %v31 = vlaneseq
    %v32 = vshrl.u32 %v31, 7
    %v33 = vsub.s32 2, %v32
    %v34 = vrot.slane %v21, %v33
    %v35 = vlaneseq
    %v36 = vshrl.u32 %v35, 7
    %v37 = vsub.s32 3, %v36
    %v38 = vrot.slane %v21, %v37
    %v44 = vcombine.high %v20, %v20
    %v46 = vunpack.c.l.s4 1983009808
    %v47 = vunpack.c.0.s8 %v46
    %v48 = vlaneseq
    %v49 = vshrl.u32 %v48, 7
    %v50 = vsub.s32 %v47, %v49
    %v51 = vrot.slane %v20, %v50
    %v53 = vunpack.c.l.s4 1983009808
    %v54 = vunpack.c.0.s8 %v53
    %v55 = vlaneseq
    %v56 = vshrl.u32 %v55, 7
    %v57 = vsub.s32 %v54, %v56
    %v58 = vrot.slane %v44, %v57
    %v59 = vcombine.high %v51, %v51
    %v60 = vcombine.high %v58, %v58
    %vm61 = vcmask 15360
    %v63 = vsel %vm61, %v18, 0
    %v66 = vsel %vm61, %v19, 0
    %vm68 = vcmask 1041408
    %v69 = vsel %vm68, %v51, 0
    %v71 = vsel %vm68, %v59, 0
    %v73 = vsel %vm68, %v58, 0
    %v75 = vsel %vm68, %v60, 0
    %77 = vmatprep.subr.mxu0 %v71
    %78 = vmatpush1.msra.mxu0 %v69
    %79 = vmatprep.subr.mxu0 0.0
    %80 = vmatpush1.msra.mxu0 0.0
    %81 = vmatprep.subr.mxu0 0.0
    %82 = vmatpush1.msra.mxu0 0.0
    %83 = vmatprep.subr.mxu0 0.0
    %84 = vmatpush1.msra.mxu0 0.0
    %85 = vmatprep.subr.mxu0 0.0
    %86 = vmatpush1.msra.mxu0 0.0
    %87 = vmatprep.subr.mxu0 0.0
    %88 = vmatpush1.msra.mxu0 0.0
    %89 = vmatprep.subr.mxu0 0.0
    %90 = vmatpush1.msra.mxu0 0.0
    %91 = vmatprep.subr.mxu0 0.0
    %92 = vmatpush1.msra.mxu0 0.0
    %93 = vmatprep.subr.mxu0 0.0
    %94 = vmatpush1.msra.mxu0 0.0
    %95 = vmatprep.subr.mxu0 0.0
    %96 = vmatpush1.msra.mxu0 0.0
    %97 = vmatprep.subr.mxu0 0.0
    %98 = vmatpush1.msra.mxu0 0.0
    %99 = vmatprep.subr.mxu0 0.0
    %100 = vmatpush1.msra.mxu0 0.0
    %101 = vmatprep.subr.mxu0 0.0
    %102 = vmatpush1.msra.mxu0 0.0
    %103 = vmatprep.subr.mxu0 0.0
    %104 = vmatpush1.msra.mxu0 0.0
    %105 = vmatprep.subr.mxu0 0.0
    %106 = vmatpush1.msra.mxu0 0.0
    %107 = vmatprep.subr.mxu0 0.0
    %108 = vmatpush1.msra.mxu0 0.0
    %109 = vmatprep.subr.mxu0 0.0
    %110 = vmatpush1.msra.mxu0 0.0
    %111 = vmatprep.subr.mxu0 0.0
    %112 = vmatpush1.msra.mxu0 0.0
    %113 = vmatprep.subr.mxu0 0.0
    %114 = vmatpush1.msra.mxu0 0.0
    %115 = vmatprep.subr.mxu0 0.0
    %116 = vmatpush1.msra.mxu0 0.0
    %117 = vmatprep.subr.mxu0 0.0
    %118 = vmatpush1.msra.mxu0 0.0
    %119 = vmatprep.subr.mxu0 0.0
    %120 = vmatpush1.msra.mxu0 0.0
    %121 = vmatprep.subr.mxu0 0.0
    %122 = vmatpush1.msra.mxu0 0.0
    %123 = vmatprep.subr.mxu0 0.0
    %124 = vmatpush1.msra.mxu0 0.0
    %125 = vmatprep.subr.mxu0 0.0
    %126 = vmatpush1.msra.mxu0 0.0
    %127 = vmatprep.subr.mxu0 0.0
    %128 = vmatpush1.msra.mxu0 0.0
    %129 = vmatprep.subr.mxu0 0.0
    %130 = vmatpush1.msra.mxu0 0.0
    %131 = vmatprep.subr.mxu0 0.0
    %132 = vmatpush1.msra.mxu0 0.0
    %133 = vmatprep.subr.mxu0 0.0
    %134 = vmatpush1.msra.mxu0 0.0
    %135 = vmatprep.subr.mxu0 0.0
    %136 = vmatpush1.msra.mxu0 0.0
    %137 = vmatprep.subr.mxu0 0.0
    %138 = vmatpush1.msra.mxu0 0.0
    %139 = vmatprep.subr.mxu0 0.0
    %140 = vmatpush1.msra.mxu0 0.0
    %141 = vmatprep.mubr.f32.mxu0 0.0
    %142 = vmatmul.mubr.f32.gmra.mrb[0].mxu0 %v63
    %v143 = vpop.f32.mrb[0].mxu0
    %v144 = vadd.f32 %v26, %v143
    %v145 = vpop.f32.mrb[0].mxu0
    %v146 = vadd.f32 %v30, %v145
    %147 = vmatprep.mubr.f32.mxu0 0.0
    %148 = vmatmul.mubr.f32.gmra.mrb[0].mxu0 %v66
    %v149 = vpop.f32.mrb[0].mxu0
    %v150 = vadd.f32 %v26, %v149
    %v151 = vpop.f32.mrb[0].mxu0
    %v152 = vadd.f32 %v30, %v151
    %153 = vdwg.mxu0
    %154 = vmatprep.subr.mxu0 %v75
    %155 = vmatpush1.msra.mxu0 %v73
    %156 = vmatprep.subr.mxu0 0.0
    %157 = vmatpush1.msra.mxu0 0.0
    %158 = vmatprep.subr.mxu0 0.0
    %159 = vmatpush1.msra.mxu0 0.0
    %160 = vmatprep.subr.mxu0 0.0
    %161 = vmatpush1.msra.mxu0 0.0
    %162 = vmatprep.subr.mxu0 0.0
    %163 = vmatpush1.msra.mxu0 0.0
    %164 = vmatprep.subr.mxu0 0.0
    %165 = vmatpush1.msra.mxu0 0.0
    %166 = vmatprep.subr.mxu0 0.0
    %167 = vmatpush1.msra.mxu0 0.0
    %168 = vmatprep.subr.mxu0 0.0
    %169 = vmatpush1.msra.mxu0 0.0
    %170 = vmatprep.subr.mxu0 0.0
    %171 = vmatpush1.msra.mxu0 0.0
    %172 = vmatprep.subr.mxu0 0.0
    %173 = vmatpush1.msra.mxu0 0.0
    %174 = vmatprep.subr.mxu0 0.0
    %175 = vmatpush1.msra.mxu0 0.0
    %176 = vmatprep.subr.mxu0 0.0
    %177 = vmatpush1.msra.mxu0 0.0
    %178 = vmatprep.subr.mxu0 0.0
    %179 = vmatpush1.msra.mxu0 0.0
    %180 = vmatprep.subr.mxu0 0.0
    %181 = vmatpush1.msra.mxu0 0.0
    %182 = vmatprep.subr.mxu0 0.0
    %183 = vmatpush1.msra.mxu0 0.0
    %184 = vmatprep.subr.mxu0 0.0
    %185 = vmatpush1.msra.mxu0 0.0
    %186 = vmatprep.subr.mxu0 0.0
    %187 = vmatpush1.msra.mxu0 0.0
    %188 = vmatprep.subr.mxu0 0.0
    %189 = vmatpush1.msra.mxu0 0.0
    %190 = vmatprep.subr.mxu0 0.0
    %191 = vmatpush1.msra.mxu0 0.0
    %192 = vmatprep.subr.mxu0 0.0
    %193 = vmatpush1.msra.mxu0 0.0
    %194 = vmatprep.subr.mxu0 0.0
    %195 = vmatpush1.msra.mxu0 0.0
    %196 = vmatprep.subr.mxu0 0.0
    %197 = vmatpush1.msra.mxu0 0.0
    %198 = vmatprep.subr.mxu0 0.0
    %199 = vmatpush1.msra.mxu0 0.0
    %200 = vmatprep.subr.mxu0 0.0
    %201 = vmatpush1.msra.mxu0 0.0
    %202 = vmatprep.subr.mxu0 0.0
    %203 = vmatpush1.msra.mxu0 0.0
    %204 = vmatprep.subr.mxu0 0.0
    %205 = vmatpush1.msra.mxu0 0.0
    %206 = vmatprep.subr.mxu0 0.0
    %207 = vmatpush1.msra.mxu0 0.0
    %208 = vmatprep.subr.mxu0 0.0
    %209 = vmatpush1.msra.mxu0 0.0
    %210 = vmatprep.subr.mxu0 0.0
    %211 = vmatpush1.msra.mxu0 0.0
    %212 = vmatprep.subr.mxu0 0.0
    %213 = vmatpush1.msra.mxu0 0.0
    %214 = vmatprep.subr.mxu0 0.0
    %215 = vmatpush1.msra.mxu0 0.0
    %216 = vmatprep.subr.mxu0 0.0
    %217 = vmatpush1.msra.mxu0 0.0
    %218 = vmatprep.mubr.f32.mxu0 0.0
    %219 = vmatmul.mubr.f32.gmra.mrb[0].mxu0 %v63
    %v220 = vpop.f32.mrb[0].mxu0
    %v221 = vadd.f32 %v34, %v220
    %v222 = vpop.f32.mrb[0].mxu0
    %v223 = vadd.f32 %v38, %v222
    %224 = vmatprep.mubr.f32.mxu0 0.0
    %225 = vmatmul.mubr.f32.gmra.mrb[0].mxu0 %v66
    %v226 = vpop.f32.mrb[0].mxu0
    %v227 = vadd.f32 %v34, %v226
    %v228 = vpop.f32.mrb[0].mxu0
    %v229 = vadd.f32 %v38, %v228
    %230 = vdwg.mxu0
    %v231 = vmax.f32 %v144, 0.0
    %v232 = vmax.f32 %v146, 0.0
    %v233 = vmax.f32 %v221, 0.0
    %v234 = vmax.f32 %v223, 0.0
    %v235 = vmax.f32 %v150, 0.0
    %v236 = vmax.f32 %v152, 0.0
    %v237 = vmax.f32 %v227, 0.0
    %v238 = vmax.f32 %v229, 0.0
    %v239 = vld [vmem:[%s3] sm:$0xff]
    %v240 = vld [vmem:[%s3 + $0x8] sm:$0xff]
    %v241 = vld [vmem:[%s3 + $0x10] sm:$0xff]
    %v242 = vld [vmem:[%s3 + $0x18] sm:$0xff]
    %v243 = vld [vmem:[%s3 + $0x20] sm:$0xff]
    %v244 = vld [vmem:[%s3 + $0x28] sm:$0xff]
    %v245 = vld [vmem:[%s3 + $0x30] sm:$0xff]
    %v246 = vld [vmem:[%s3 + $0x38] sm:$0xff]
    %v247 = vld [vmem:[%s3 + $0x40] sm:$0xff]
    %v248 = vld [vmem:[%s3 + $0x48] sm:$0xff]
    %v249 = vld [vmem:[%s3 + $0x50] sm:$0xff]
    %v250 = vld [vmem:[%s3 + $0x58] sm:$0xff]
    %v251 = vld [vmem:[%s3 + $0x60] sm:$0xff]
    %v252 = vld [vmem:[%s3 + $0x68] sm:$0xff]
    %v253 = vld [vmem:[%s3 + $0x70] sm:$0xff]
    %v254 = vld [vmem:[%s3 + $0x78] sm:$0xff]
    %v255 = vld [vmem:[%s3 + $0x80] sm:$0xff]
    %v256 = vld [vmem:[%s3 + $0x88] sm:$0xff]
    %v257 = vld [vmem:[%s3 + $0x90] sm:$0xff]
    %v258 = vld [vmem:[%s3 + $0x98] sm:$0xff]
    %v259 = vld [vmem:[%s3 + $0xa0] sm:$0xff]
    %v260 = vld [vmem:[%s3 + $0xa8] sm:$0xff]
    %v261 = vld [vmem:[%s3 + $0xb0] sm:$0xff]
    %v262 = vld [vmem:[%s3 + $0xb8] sm:$0xff]
    %v263 = vld [vmem:[%s3 + $0xc0] sm:$0xff]
    %v264 = vld [vmem:[%s3 + $0xc8] sm:$0xff]
    %v265 = vld [vmem:[%s3 + $0xd0] sm:$0xff]
    %v266 = vld [vmem:[%s3 + $0xd8] sm:$0xff]
    %v267 = vld [vmem:[%s3 + $0xe0] sm:$0xff]
    %v268 = vld [vmem:[%s3 + $0xe8] sm:$0xff]
    %v269 = vld [vmem:[%s3 + $0xf0] sm:$0xff]
    %v270 = vld [vmem:[%s3 + $0xf8] sm:$0xff]
    %v271 = vld [vmem:[%s3 + $0x100] sm:$0xff]
    %v272 = vld [vmem:[%s3 + $0x108] sm:$0xff]
    %v273 = vld [vmem:[%s3 + $0x110] sm:$0xff]
    %v274 = vld [vmem:[%s3 + $0x118] sm:$0xff]
    %v275 = vld [vmem:[%s3 + $0x120] sm:$0xff]
    %v276 = vld [vmem:[%s3 + $0x128] sm:$0xff]
    %v277 = vld [vmem:[%s3 + $0x130] sm:$0xff]
    %v278 = vld [vmem:[%s3 + $0x138] sm:$0xff]
    %v279 = vld [vmem:[%s3 + $0x140] sm:$0xff]
    %v280 = vld [vmem:[%s3 + $0x148] sm:$0xff]
    %v281 = vld [vmem:[%s3 + $0x150] sm:$0xff]
    %v282 = vld [vmem:[%s3 + $0x158] sm:$0xff]
    %v283 = vld [vmem:[%s3 + $0x160] sm:$0xff]
    %v284 = vld [vmem:[%s3 + $0x168] sm:$0xff]
    %v285 = vld [vmem:[%s3 + $0x170] sm:$0xff]
    %v286 = vld [vmem:[%s3 + $0x178] sm:$0xff]
    %v287 = vld [vmem:[%s3 + $0x180] sm:$0xff]
    %v288 = vld [vmem:[%s3 + $0x188] sm:$0xff]
    %v289 = vld [vmem:[%s3 + $0x190] sm:$0xff]
    %v290 = vld [vmem:[%s3 + $0x198] sm:$0xff]
    %v291 = vld [vmem:[%s3 + $0x1a0] sm:$0xff]
    %v292 = vld [vmem:[%s3 + $0x1a8] sm:$0xff]
    %v293 = vld [vmem:[%s3 + $0x1b0] sm:$0xff]
    %v294 = vld [vmem:[%s3 + $0x1b8] sm:$0xff]
    %v295 = vld [vmem:[%s3 + $0x1c0] sm:$0xff]
    %v296 = vld [vmem:[%s3 + $0x1c8] sm:$0xff]
    %v297 = vld [vmem:[%s3 + $0x1d0] sm:$0xff]
    %v298 = vld [vmem:[%s3 + $0x1d8] sm:$0xff]
    %v299 = vld [vmem:[%s3 + $0x1e0] sm:$0xff]
    %v300 = vld [vmem:[%s3 + $0x1e8] sm:$0xff]
    %v301 = vld [vmem:[%s3 + $0x1f0] sm:$0xff]
    %v302 = vld [vmem:[%s3 + $0x1f8] sm:$0xff]
    %303 = vmatprep.subr.mxu0 0.0
    %304 = vmatpush1.msra.mxu0 %v239
    %305 = vmatprep.subr.mxu0 0.0
    %306 = vmatpush1.msra.mxu0 %v240
    %307 = vmatprep.subr.mxu0 0.0
    %308 = vmatpush1.msra.mxu0 %v241
    %309 = vmatprep.subr.mxu0 0.0
    %310 = vmatpush1.msra.mxu0 %v242
    %311 = vmatprep.subr.mxu0 0.0
    %312 = vmatpush1.msra.mxu0 %v243
    %313 = vmatprep.subr.mxu0 0.0
    %314 = vmatpush1.msra.mxu0 %v244
    %315 = vmatprep.subr.mxu0 0.0
    %316 = vmatpush1.msra.mxu0 %v245
    %317 = vmatprep.subr.mxu0 0.0
    %318 = vmatpush1.msra.mxu0 %v246
    %319 = vmatprep.subr.mxu0 0.0
    %320 = vmatpush1.msra.mxu0 %v247
    %321 = vmatprep.subr.mxu0 0.0
    %322 = vmatpush1.msra.mxu0 %v248
    %323 = vmatprep.subr.mxu0 0.0
    %324 = vmatpush1.msra.mxu0 %v249
    %325 = vmatprep.subr.mxu0 0.0
    %326 = vmatpush1.msra.mxu0 %v250
    %327 = vmatprep.subr.mxu0 0.0
    %328 = vmatpush1.msra.mxu0 %v251
    %329 = vmatprep.subr.mxu0 0.0
    %330 = vmatpush1.msra.mxu0 %v252
    %331 = vmatprep.subr.mxu0 0.0
    %332 = vmatpush1.msra.mxu0 %v253
    %333 = vmatprep.subr.mxu0 0.0
    %334 = vmatpush1.msra.mxu0 %v254
    %335 = vmatprep.subr.mxu0 0.0
    %336 = vmatpush1.msra.mxu0 %v255
    %337 = vmatprep.subr.mxu0 0.0
    %338 = vmatpush1.msra.mxu0 %v256
    %339 = vmatprep.subr.mxu0 0.0
    %340 = vmatpush1.msra.mxu0 %v257
    %341 = vmatprep.subr.mxu0 0.0
    %342 = vmatpush1.msra.mxu0 %v258
    %343 = vmatprep.subr.mxu0 0.0
    %344 = vmatpush1.msra.mxu0 %v259
    %345 = vmatprep.subr.mxu0 0.0
    %346 = vmatpush1.msra.mxu0 %v260
    %347 = vmatprep.subr.mxu0 0.0
    %348 = vmatpush1.msra.mxu0 %v261
    %349 = vmatprep.subr.mxu0 0.0
    %350 = vmatpush1.msra.mxu0 %v262
    %351 = vmatprep.subr.mxu0 0.0
    %352 = vmatpush1.msra.mxu0 %v263
    %353 = vmatprep.subr.mxu0 0.0
    %354 = vmatpush1.msra.mxu0 %v264
    %355 = vmatprep.subr.mxu0 0.0
    %356 = vmatpush1.msra.mxu0 %v265
    %357 = vmatprep.subr.mxu0 0.0
    %358 = vmatpush1.msra.mxu0 %v266
    %359 = vmatprep.subr.mxu0 0.0
    %360 = vmatpush1.msra.mxu0 %v267
    %361 = vmatprep.subr.mxu0 0.0
    %362 = vmatpush1.msra.mxu0 %v268
    %363 = vmatprep.subr.mxu0 0.0
    %364 = vmatpush1.msra.mxu0 %v269
    %365 = vmatprep.subr.mxu0 0.0
    %366 = vmatpush1.msra.mxu0 %v270
    %367 = vmatprep.mubr.f32.mxu0 %v232
    %368 = vmatmul.mubr.f32.gmra.mrb[0].mxu0 %v231
    %v369 = vpop.f32.mrb[0].mxu0
    %v370 = vadd.f32 0.0, %v369
    %v371 = vpop.f32.mrb[0].mxu0
    %372 = vmatprep.mubr.f32.mxu0 %v236
    %373 = vmatmul.mubr.f32.gmra.mrb[0].mxu0 %v235
    %v374 = vpop.f32.mrb[0].mxu0
    %v375 = vadd.f32 0.0, %v374
    %v376 = vpop.f32.mrb[0].mxu0
    %377 = vdwg.mxu0
    %378 = vmatprep.subr.mxu0 0.0
    %379 = vmatpush1.msra.mxu0 %v271
    %380 = vmatprep.subr.mxu0 0.0
    %381 = vmatpush1.msra.mxu0 %v272
    %382 = vmatprep.subr.mxu0 0.0
    %383 = vmatpush1.msra.mxu0 %v273
    %384 = vmatprep.subr.mxu0 0.0
    %385 = vmatpush1.msra.mxu0 %v274
    %386 = vmatprep.subr.mxu0 0.0
    %387 = vmatpush1.msra.mxu0 %v275
    %388 = vmatprep.subr.mxu0 0.0
    %389 = vmatpush1.msra.mxu0 %v276
    %390 = vmatprep.subr.mxu0 0.0
    %391 = vmatpush1.msra.mxu0 %v277
    %392 = vmatprep.subr.mxu0 0.0
    %393 = vmatpush1.msra.mxu0 %v278
    %394 = vmatprep.subr.mxu0 0.0
    %395 = vmatpush1.msra.mxu0 %v279
    %396 = vmatprep.subr.mxu0 0.0
    %397 = vmatpush1.msra.mxu0 %v280
    %398 = vmatprep.subr.mxu0 0.0
    %399 = vmatpush1.msra.mxu0 %v281
    %400 = vmatprep.subr.mxu0 0.0
    %401 = vmatpush1.msra.mxu0 %v282
    %402 = vmatprep.subr.mxu0 0.0
    %403 = vmatpush1.msra.mxu0 %v283
    %404 = vmatprep.subr.mxu0 0.0
    %405 = vmatpush1.msra.mxu0 %v284
    %406 = vmatprep.subr.mxu0 0.0
    %407 = vmatpush1.msra.mxu0 %v285
    %408 = vmatprep.subr.mxu0 0.0
    %409 = vmatpush1.msra.mxu0 %v286
    %410 = vmatprep.subr.mxu0 0.0
    %411 = vmatpush1.msra.mxu0 %v287
    %412 = vmatprep.subr.mxu0 0.0
    %413 = vmatpush1.msra.mxu0 %v288
    %414 = vmatprep.subr.mxu0 0.0
    %415 = vmatpush1.msra.mxu0 %v289
    %416 = vmatprep.subr.mxu0 0.0
    %417 = vmatpush1.msra.mxu0 %v290
    %418 = vmatprep.subr.mxu0 0.0
    %419 = vmatpush1.msra.mxu0 %v291
    %420 = vmatprep.subr.mxu0 0.0
    %421 = vmatpush1.msra.mxu0 %v292
    %422 = vmatprep.subr.mxu0 0.0
    %423 = vmatpush1.msra.mxu0 %v293
    %424 = vmatprep.subr.mxu0 0.0
    %425 = vmatpush1.msra.mxu0 %v294
    %426 = vmatprep.subr.mxu0 0.0
    %427 = vmatpush1.msra.mxu0 %v295
    %428 = vmatprep.subr.mxu0 0.0
    %429 = vmatpush1.msra.mxu0 %v296
    %430 = vmatprep.subr.mxu0 0.0
    %431 = vmatpush1.msra.mxu0 %v297
    %432 = vmatprep.subr.mxu0 0.0
    %433 = vmatpush1.msra.mxu0 %v298
    %434 = vmatprep.subr.mxu0 0.0
    %435 = vmatpush1.msra.mxu0 %v299
    %436 = vmatprep.subr.mxu0 0.0
    %437 = vmatpush1.msra.mxu0 %v300
    %438 = vmatprep.subr.mxu0 0.0
    %439 = vmatpush1.msra.mxu0 %v301
    %440 = vmatprep.subr.mxu0 0.0
    %441 = vmatpush1.msra.mxu0 %v302
    %442 = vmatprep.mubr.f32.mxu0 %v234
    %443 = vmatmul.mubr.f32.gmra.mrb[0].mxu0 %v233
    %v444 = vpop.f32.mrb[0].mxu0
    %v445 = vadd.f32 %v370, %v444
    %v446 = vpop.f32.mrb[0].mxu0
    %447 = vmatprep.mubr.f32.mxu0 %v238
    %448 = vmatmul.mubr.f32.gmra.mrb[0].mxu0 %v237
    %v449 = vpop.f32.mrb[0].mxu0
    %v450 = vadd.f32 %v375, %v449
    %v451 = vpop.f32.mrb[0].mxu0
    %452 = vdwg.mxu0
    %vm453 = vcmask 261120
    %454 = vst.msk [vmem:[#allocation2] sm:$0xff] %vm453, %v445
    %455 = vst.msk [vmem:[#allocation2 + $0x8] sm:$0xff] %vm453, %v450
    // Predicated region
    $region18: #{tpu_custom_call.1} parent=1 // pred_check
      _
    $region19: #{tpu_custom_call.1} parent=1 // pred_check_branch
      %457 = sbr.rel (0) target = $region21
    $region20: #{tpu_custom_call.1} parent=1 // pred_region
      %s459 = ssub.s32 256, 256
      %460 = vsyncadd [#allocation3], %s459
      %s461 = sshll.u32 [#allocation2], 4
      %s462 = int_to_ptr.vmem [resolvable:$true] %s461
      %467 = dma.vmem_to_hbm [thread:$0]  %s462, 256, %s4, [#allocation3], 128, 128, 8
    $region21: #{tpu_custom_call.1} parent=1 // pred_fallthru
      _
    // Predicated region
    $region22: #{tpu_custom_call.1} parent=1 // pred_check
      _
    $region23: #{tpu_custom_call.1} parent=1 // pred_check_branch
      %469 = sbr.rel (0) target = $region25
    $region24: #{tpu_custom_call.1} parent=1 // pred_region
      %470 = dma.done [#allocation3], 256
    $region25: #{tpu_custom_call.1} parent=1 // pred_fallthru
      _
    %471 = vsyncpa [#allocation3], 1

</llo_original>
